<compile_context>
chip_gen: v5e
topology: v5e:2x2
jax: 0.10.0
libtpu: 0.0.40
codegen_flags: <defaults>
</compile_context>

<pallas_src>
import functools

import jax
import jax.numpy as jnp
from jax.experimental import pallas as pl
from jax.experimental.pallas import tpu as pltpu

_LANE = 128
_SUB = 8


def _static_pow(v, gamma):
    """v ** gamma; repeated multiplies when gamma is a non-negative integer."""
    g = float(gamma)
    if g.is_integer() and g >= 0:
        gi = int(g)
        if gi == 0:
            return jnp.ones_like(v)
        out, base = None, v
        while gi:
            if gi & 1:
                out = base if out is None else out * base
            gi >>= 1
            if gi:
                base = base * base
        return out
    return v ** g


def _focal_loss_kernel(x_ref, t_ref, out_ref, acc_ref, *,
                       alpha, gamma, inv_n, rows_valid, tile_rows,
                       nb, mask_last, has_phantom):
    i = pl.program_id(1)
    ni = pl.num_programs(1)
    b = pl.program_id(0) * ni + i          # global row-block index

    @pl.when(i == 0)
    def _init():
        acc_ref[...] = jnp.zeros_like(acc_ref)

    def _compute_and_fold():
        # Native-dtype DMA; all arithmetic in f32.
        x = x_ref[...].astype(jnp.float32)
        t = t_ref[...].astype(jnp.float32)
        # Numerically-stable BCE-with-logits (reduction='none'), PyTorch parity.
        bce = jnp.maximum(x, 0.0) - x * t + jnp.log1p(jnp.exp(-jnp.abs(x)))
        pt = jnp.exp(-bce)
        fl = alpha * _static_pow(1.0 - pt, gamma) * bce

        def _fold(v):
            # (tile_rows, 128) -> resident (8, 128) accumulator. The reshape
            # splits the sublane axis on an 8-boundary (layout preserving);
            # the leading-axis sum is pure VPU work — no XLU per step.
            acc_ref[...] += v.reshape(-1, _SUB, _LANE).sum(axis=0)

        if mask_last:
            # Only the boundary block (Pallas-padded garbage rows past the end
            # of the array) pays for the mask; interior blocks run lean.
            @pl.when(b == nb - 1)
            def _boundary():
                row = (jax.lax.broadcasted_iota(jnp.int32, fl.shape, 0)
                       + b * tile_rows)
                _fold(jnp.where(row < rows_valid, fl, 0.0))

            @pl.when(b < nb - 1)
            def _interior():
                _fold(fl)
        else:
            _fold(fl)

    if has_phantom:
        # Odd block count split across 2 cores: one core's last step is a
        # phantom (clamped re-read of the final block); skip its contribution.
        @pl.when(b < nb)
        def _valid():
            _compute_and_fold()
    else:
        _compute_and_fold()

    @pl.when(i == ni - 1)
    def _finalize():
        out_ref[0, 0] = jnp.sum(acc_ref[...]) * inv_n


def focal_loss(inputs, targets, alpha=0.25, gamma=2):
    """Pallas FocalLoss. inputs (logits) and targets: same arbitrary shape."""
    assert inputs.shape == targets.shape
    n = int(inputs.size)

    xf = inputs.reshape(-1)
    tf = targets.reshape(-1)

    # Lane-dense (rows, 128) view of the flat tensor (bitcast-level reshape of
    # a contiguous array; no relayout copy). Pad only when n is not 128-aligned
    # (or tiny): the pad uses the analytic-zero sentinel (x=+100, t=1) whose
    # focal loss is exactly 0 in f32, so no lane-level masking is ever needed.
    rows = -(-n // _LANE)
    rows = max(rows, _SUB)                 # at least one full (8, 128) tile
    n_pad = rows * _LANE
    if n_pad != n:
        xf = jnp.pad(xf, (0, n_pad - n), constant_values=100.0)
        tf = jnp.pad(tf, (0, n_pad - n), constant_values=1.0)
    x2 = xf.reshape(rows, _LANE)
    t2 = tf.reshape(rows, _LANE)

    # Tile sizing: ~4 MiB per input tile -> 2 inputs x 2 buffers ~= 16 MiB of
    # live VMEM, comfortably inside the 32 MiB scoped limit on v5e/v6e/v7x.
    itemsize = max(jnp.dtype(inputs.dtype).itemsize,
                   jnp.dtype(targets.dtype).itemsize)
    row_bytes = _LANE * itemsize
    target_tile_bytes = 4 * 1024 * 1024
    tile_cap = max(_SUB, (target_tile_bytes // row_bytes) // _SUB * _SUB)
    tile_rows = min(tile_cap, rows // _SUB * _SUB)   # multiple of 8, <= rows

    nb = -(-rows // tile_rows)             # total row-blocks (last may be partial)
    ncores = 2 if nb >= 2 else 1           # 2-TC parts (v7x) take one half each
    inner = -(-nb // ncores)
    mask_last = (rows % tile_rows) != 0
    has_phantom = (nb % ncores) != 0

    if has_phantom:
        def in_map(c, i):                  # clamp the phantom step's block index
            return (jnp.minimum(c * inner + i, nb - 1), 0)
    else:
        def in_map(c, i):
            return (c * inner + i, 0)

    kernel = functools.partial(
        _focal_loss_kernel,
        alpha=float(alpha),
        gamma=gamma,
        inv_n=1.0 / float(n),
        rows_valid=rows,
        tile_rows=tile_rows,
        nb=nb,
        mask_last=mask_last,
        has_phantom=has_phantom,
    )

    partials = pl.pallas_call(
        kernel,
        out_shape=jax.ShapeDtypeStruct((ncores, 1), jnp.float32),
        grid_spec=pltpu.PrefetchScalarGridSpec(
            num_scalar_prefetch=0,
            grid=(ncores, inner),
            in_specs=[
                pl.BlockSpec((tile_rows, _LANE), in_map),
                pl.BlockSpec((tile_rows, _LANE), in_map),
            ],
            out_specs=pl.BlockSpec((1, 1), lambda c, i: (c, 0),
                                   memory_space=pltpu.SMEM),
            scratch_shapes=[pltpu.VMEM((_SUB, _LANE), jnp.float32)],
        ),
        compiler_params=pltpu.CompilerParams(
            dimension_semantics=("parallel", "arbitrary"),
            vmem_limit_bytes=32 * 1024 * 1024,
        ),
    )(x2, t2)
    return jnp.sum(partials)


def focal_loss_ref(inputs, targets, alpha=0.25, gamma=2):
    """Pure-JAX reference mirroring the PyTorch module."""
    x = inputs.astype(jnp.float32)
    t = targets.astype(jnp.float32)
    bce = jnp.maximum(x, 0.0) - x * t + jnp.log1p(jnp.exp(-jnp.abs(x)))
    pt = jnp.exp(-bce)
    return jnp.mean(alpha * (1.0 - pt) ** gamma * bce)


if __name__ == "__main__":
    B, C, H, W = 2, 4, 16, 16
    alpha, gamma = 0.25, 2

    key = jax.random.PRNGKey(0)
    k1, k2 = jax.random.split(key)
    logits = jax.random.normal(k1, (B, C, H, W), dtype=jnp.float32)
    targets = (jax.random.uniform(k2, (B, C, H, W)) > 0.5).astype(jnp.float32)

    loss = jax.block_until_ready(focal_loss(logits, targets, alpha=alpha, gamma=gamma))
    ref = jax.block_until_ready(focal_loss_ref(logits, targets, alpha=alpha, gamma=gamma))
    assert jnp.allclose(loss, ref, atol=1e-5, rtol=1e-5), (loss, ref)

    print("KERNEL_OK")
</pallas_src>

<mosaic_0001>
module attributes {stable_mosaic.version = 11 : i64} {
  func.func @_focal_loss_kernel(%arg0: i32, %arg1: i32, %arg2: memref<16x128xf32, #tpu.memory_space<vmem>>, %arg3: memref<16x128xf32, #tpu.memory_space<vmem>>, %arg4: memref<1x1xf32, #tpu.memory_space<smem>>, %arg5: memref<8x128xf32, #tpu.memory_space<vmem>>) attributes {dimension_semantics = [#tpu.dimension_semantics<parallel>, #tpu.dimension_semantics<arbitrary>], iteration_bounds = array<i64: 1, 1>, scalar_prefetch = 0 : i64, scratch_operands = 1 : i64, tpu.core_type = #tpu.core_type<tc>, window_params = [{transform_indices = @transform_0, window_bounds = array<i64: 16, 128>}, {transform_indices = @transform_1, window_bounds = array<i64: 16, 128>}, {transform_indices = @transform_2, window_bounds = array<i64: 1, 1>}]} {
    %c0_i32 = arith.constant 0 : i32
    %0 = arith.cmpi eq, %arg1, %c0_i32 : i32
    %1 = arith.extui %0 : i1 to i32
    %c0_i32_0 = arith.constant 0 : i32
    %2 = arith.cmpi ne, %1, %c0_i32_0 : i32
    scf.if %2 {
      %cst_15 = arith.constant 0.000000e+00 : f32
      %32 = vector.broadcast %cst_15 : f32 to vector<8x128xf32>
      %c0_16 = arith.constant 0 : index
      %c0_17 = arith.constant 0 : index
      %33 = vector.load %arg5[%c0_16, %c0_17] : memref<8x128xf32, #tpu.memory_space<vmem>>, vector<8x128xf32>
      tpu.vector_store %arg5[%c0_16, %c0_17], %32 {strides = array<i32>} : memref<8x128xf32, #tpu.memory_space<vmem>>, vector<8x128xf32>,
    } else {
    }
    %c0 = arith.constant 0 : index
    %c0_1 = arith.constant 0 : index
    %3 = vector.load %arg2[%c0, %c0_1] : memref<16x128xf32, #tpu.memory_space<vmem>>, vector<16x128xf32>
    %c0_2 = arith.constant 0 : index
    %c0_3 = arith.constant 0 : index
    %4 = vector.load %arg3[%c0_2, %c0_3] : memref<16x128xf32, #tpu.memory_space<vmem>>, vector<16x128xf32>
    %cst = arith.constant 0.000000e+00 : f32
    %5 = vector.broadcast %cst : f32 to vector<16x128xf32>
    %6 = arith.maximumf %3, %5 : vector<16x128xf32>
    %7 = arith.mulf %3, %4 : vector<16x128xf32>
    %8 = arith.subf %6, %7 : vector<16x128xf32>
    %9 = math.absf %3 : vector<16x128xf32>
    %cst_4 = arith.constant 0.000000e+00 : f32
    %10 = vector.broadcast %cst_4 : f32 to vector<16x128xf32>
    %11 = arith.subf %10, %9 : vector<16x128xf32>
    %12 = math.exp %11 : vector<16x128xf32>
    %13 = math.log1p %12 : vector<16x128xf32>
    %14 = arith.addf %8, %13 : vector<16x128xf32>
    %cst_5 = arith.constant 0.000000e+00 : f32
    %15 = vector.broadcast %cst_5 : f32 to vector<16x128xf32>
    %16 = arith.subf %15, %14 : vector<16x128xf32>
    %17 = math.exp %16 : vector<16x128xf32>
    %cst_6 = arith.constant 1.000000e+00 : f32
    %18 = vector.broadcast %cst_6 : f32 to vector<16x128xf32>
    %19 = arith.subf %18, %17 : vector<16x128xf32>
    %20 = arith.mulf %19, %19 : vector<16x128xf32>
    %cst_7 = arith.constant 2.500000e-01 : f32
    %21 = vector.broadcast %cst_7 : f32 to vector<16x128xf32>
    %22 = arith.mulf %21, %20 : vector<16x128xf32>
    %23 = arith.mulf %22, %14 : vector<16x128xf32>
    %c0_8 = arith.constant 0 : index
    %c0_9 = arith.constant 0 : index
    %24 = vector.load %arg5[%c0_8, %c0_9] : memref<8x128xf32, #tpu.memory_space<vmem>>, vector<8x128xf32>
    %25 = vector.shape_cast %23 : vector<16x128xf32> to vector<2x8x128xf32>
    %cst_10 = arith.constant dense<0.000000e+00> : vector<8x128xf32>
    %26 = vector.multi_reduction <add>, %25, %cst_10 [0] : vector<2x8x128xf32> to vector<8x128xf32>
    %27 = arith.addf %24, %26 : vector<8x128xf32>
    %c0_11 = arith.constant 0 : index
    %c0_12 = arith.constant 0 : index
    %28 = vector.load %arg5[%c0_11, %c0_12] : memref<8x128xf32, #tpu.memory_space<vmem>>, vector<8x128xf32>
    tpu.vector_store %arg5[%c0_11, %c0_12], %27 {strides = array<i32>} : memref<8x128xf32, #tpu.memory_space<vmem>>, vector<8x128xf32>,
    %c0_i32_13 = arith.constant 0 : i32
    %29 = arith.cmpi eq, %arg1, %c0_i32_13 : i32
    %30 = arith.extui %29 : i1 to i32
    %c0_i32_14 = arith.constant 0 : i32
    %31 = arith.cmpi ne, %30, %c0_i32_14 : i32
    scf.if %31 {
      %c0_15 = arith.constant 0 : index
      %c0_16 = arith.constant 0 : index
      %32 = vector.load %arg5[%c0_15, %c0_16] : memref<8x128xf32, #tpu.memory_space<vmem>>, vector<8x128xf32>
      %33 = vector.shape_cast %32 : vector<8x128xf32> to vector<1x8x128xf32>
      %cst_17 = arith.constant dense<0.000000e+00> : vector<1xf32>
      %34 = vector.multi_reduction <add>, %33, %cst_17 [1, 2] : vector<1x8x128xf32> to vector<1xf32>
      %35 = vector.shape_cast %34 : vector<1xf32> to vector<1x1x1xf32>
      %36 = vector.extract %35[0, 0, 0] : f32 from vector<1x1x1xf32>
      %cst_18 = arith.constant 4.8828125E-4 : f32
      %37 = arith.mulf %36, %cst_18 : f32
      %c0_19 = arith.constant 0 : index
      %c0_20 = arith.constant 0 : index
      %38 = memref.load %arg4[%c0_19, %c0_20] : memref<1x1xf32, #tpu.memory_space<smem>>
      memref.store %37, %arg4[%c0_19, %c0_20] : memref<1x1xf32, #tpu.memory_space<smem>>
    } else {
    }
    return
  }
  func.func @transform_0(%arg0: i32, %arg1: i32) -> (i32, i32) {
    %c1_i32 = arith.constant 1 : i32
    %0 = arith.muli %arg0, %c1_i32 : i32
    %1 = arith.addi %0, %arg1 : i32
    %c0_i32 = arith.constant 0 : i32
    %c0_i32_0 = arith.constant 0 : i32
    return %1, %c0_i32 : i32, i32
  }
  func.func @transform_1(%arg0: i32, %arg1: i32) -> (i32, i32) {
    %c1_i32 = arith.constant 1 : i32
    %0 = arith.muli %arg0, %c1_i32 : i32
    %1 = arith.addi %0, %arg1 : i32
    %c0_i32 = arith.constant 0 : i32
    %c0_i32_0 = arith.constant 0 : i32
    return %1, %c0_i32 : i32, i32
  }
  func.func @transform_2(%arg0: i32, %arg1: i32) -> (i32, i32) {
    %c0_i32 = arith.constant 0 : i32
    %c0_i32_0 = arith.constant 0 : i32
    return %arg0, %c0_i32 : i32, i32
  }
}

</mosaic_0001>

<llo_original>
// kernel: tpu_custom_call.1
$region0: #{tpu_custom_call.1}
  #allocation0 [shape = 'u32[]', space=smem, size = 0x4, offset = 0x4, fixed_abs, tag = 'smem constant byte address 0x4 - core index']
  #allocation1 [shape = 'u32[72,128]{1,0:T(1,128)}', space=vmem, size = 0x9000, scoped, tag = 'internal scratch']
  #allocation2 [shape = 'f32[8,128]{1,0:T(8,128)}', space=vmem, size = 0x1000, scoped, tag = 'scratch operand']
  %s0 = inlined_call_operand.hbm [shape: f32[16,128], index: 0, kind: input, shape index: {}]
  %s1 = inlined_call_operand.hbm [shape: f32[16,128], index: 1, kind: input, shape index: {}]
  %s2 = inlined_call_operand.hbm [shape: f32[1,1], index: 2, kind: output, shape index: {}]
  %s3 = sld [smem:[#allocation0]]
  $region34: #{tpu_custom_call.1} parent=0
    _
  %s5 = ssub.s32 1, %s3
  %s6 = scalar_select 0, %s5, %s3
  $region1: #{tpu_custom_call.1} parent=0
    #allocation3 [shape = 'u8[8192]{0}', space=vmem, size = 0x2000, scoped, tag = 'input window, operand 0, single buffered']
    #allocation4 [shape = 's32[1]{0}', space=sflag, size = 0x4, scoped, tag = 'scoped memory for tpu_custom_call.1']
    #allocation5 [shape = 's32[1]{0}', space=sflag, size = 0x4, scoped, tag = 'scoped memory for tpu_custom_call.1']
    #allocation6 [shape = 'u8[8192]{0}', space=vmem, size = 0x2000, scoped, tag = 'input window, operand 1, single buffered']
    #allocation7 [shape = 's32[1]{0}', space=sflag, size = 0x4, scoped, tag = 'scoped memory for tpu_custom_call.1']
    #allocation8 [shape = 'u8[512]{0}', space=smem, size = 0x200, scoped, tag = 'output window, operand 0, single buffered']
    %7 = vsyncpa [#allocation4], 0
    %8 = vsyncpa [#allocation7], 0
    %9 = vsyncpa [#allocation5], 0
    // Predicated region
    $region2: #{tpu_custom_call.1} parent=1 // pred_check
      _
    $region3: #{tpu_custom_call.1} parent=1 // pred_check_branch
      %11 = sbr.rel (0) target = $region5
    $region4: #{tpu_custom_call.1} parent=1 // pred_region
      %s12 = sadd.s32 0, 0
      %s13 = smul.u32 2, %s12
      %15 = vsyncadd [#allocation4], 0
      %s16 = smul.addr %s13, 8
      %s17 = scalar_lea.hbm %s0, %s16
      %s18 = sshll.u32 %s17, 4
      %s19 = int_to_ptr.hbm [resolvable:$true] %s18
      %s20 = sshll.u32 [#allocation3], 4
      %s21 = int_to_ptr.vmem [resolvable:$true] %s20
      %26 = dma.hbm_to_vmem [thread:$0]  %s19, 256, %s21, [#allocation4], 128, 128, 8
    $region5: #{tpu_custom_call.1} parent=1 // pred_fallthru
      _
    // Predicated region
    $region6: #{tpu_custom_call.1} parent=1 // pred_check
      _
    $region7: #{tpu_custom_call.1} parent=1 // pred_check_branch
      %28 = sbr.rel (0) target = $region9
    $region8: #{tpu_custom_call.1} parent=1 // pred_region
      %s29 = sadd.s32 0, 0
      %s30 = smul.u32 2, %s29
      %32 = vsyncadd [#allocation7], 0
      %s33 = smul.addr %s30, 8
      %s34 = scalar_lea.hbm %s1, %s33
      %s35 = sshll.u32 %s34, 4
      %s36 = int_to_ptr.hbm [resolvable:$true] %s35
      %s37 = sshll.u32 [#allocation6], 4
      %s38 = int_to_ptr.vmem [resolvable:$true] %s37
      %43 = dma.hbm_to_vmem [thread:$0]  %s36, 256, %s38, [#allocation7], 128, 128, 8
    $region9: #{tpu_custom_call.1} parent=1 // pred_fallthru
      _
    // Predicated region
    $region10: #{tpu_custom_call.1} parent=1 // pred_check
      _
    $region11: #{tpu_custom_call.1} parent=1 // pred_check_branch
      %45 = sbr.rel (0) target = $region13
    $region12: #{tpu_custom_call.1} parent=1 // pred_region
      %47 = dma.done [#allocation4], 256
    $region13: #{tpu_custom_call.1} parent=1 // pred_fallthru
      _
    // Predicated region
    $region14: #{tpu_custom_call.1} parent=1 // pred_check
      _
    $region15: #{tpu_custom_call.1} parent=1 // pred_check_branch
      %49 = sbr.rel (0) target = $region17
    $region16: #{tpu_custom_call.1} parent=1 // pred_region
      %51 = dma.done [#allocation7], 256
    $region17: #{tpu_custom_call.1} parent=1 // pred_fallthru
      _
    %s52 = sadd.s32 0, 0
    %s53 = smul.u32 2, %s52
    %s54 = sadd.s32 0, 0
    %s55 = smul.u32 2, %s54
    %p56 = scmp.eq.s32.totalorder 0, 0
    // Predicated region
    $region18: #{tpu_custom_call.1} parent=1 // pred_check
      %p57 = pneg %p56
    $region19: #{tpu_custom_call.1} parent=1 // pred_check_branch
      %59 = sbr.rel (%p57) target = $region21
    $region20: #{tpu_custom_call.1} parent=1 // pred_region
      %60 = vst [vmem:[#allocation2] sm:$0xff] 0.0
    $region21: #{tpu_custom_call.1} parent=1 // pred_fallthru
      _
    %v61 = vld [vmem:[#allocation3] sm:$0xff]
    %v62 = vld [vmem:[#allocation3 + $0x8] sm:$0xff]
    %v63 = vld [vmem:[#allocation6] sm:$0xff]
    %v64 = vld [vmem:[#allocation6 + $0x8] sm:$0xff]
    %v65 = vmax.f32 %v61, 0.0
    %v66 = vmax.f32 %v62, 0.0
    %v67 = vmul.f32 %v61, %v63
    %v68 = vmul.f32 %v62, %v64
    %v69 = vsub.f32 %v65, %v67
    %v70 = vsub.f32 %v66, %v68
    %v71 = vand.u32 2147483647, %v61
    %v72 = vand.u32 2147483647, %v62
    %v73 = vsub.f32 0.0, %v71
    %v74 = vsub.f32 0.0, %v72
    %v75 = vmul.f32 %v73, 1.442695
    %v76 = vpow.pop %v75
    %v77 = vmul.f32 %v74, 1.442695
    %v78 = vpow.pop %v77
    %v79 = vadd.f32 %v76, 1.0
    %v80 = vlog2.pop %v79
    %v81 = vmul.f32 %v80, 0.6931472
    %v82 = vmul.f32 -0.5, %v76
    %v83 = vadd.f32 %v82, 1.0
    %v84 = vmul.f32 %v83, %v76
    %v85 = vand.u32 2147483647, %v76
    %vm86 = vcmp.lt.f32.partialorder %v85, 0.0004427343
    %v87 = vsel %vm86, %v84, %v81
    %v88 = vadd.f32 %v78, 1.0
    %v89 = vlog2.pop %v88
    %v90 = vmul.f32 %v89, 0.6931472
    %v91 = vmul.f32 -0.5, %v78
    %v92 = vadd.f32 %v91, 1.0
    %v93 = vmul.f32 %v92, %v78
    %v94 = vand.u32 2147483647, %v78
    %vm95 = vcmp.lt.f32.partialorder %v94, 0.0004427343
    %v96 = vsel %vm95, %v93, %v90
    %v97 = vadd.f32 %v69, %v87
    %v98 = vadd.f32 %v70, %v96
    %v99 = vsub.f32 0.0, %v97
    %v100 = vsub.f32 0.0, %v98
    %v101 = vmul.f32 %v99, 1.442695
    %v102 = vpow.pop %v101
    %v103 = vmul.f32 %v100, 1.442695
    %v104 = vpow.pop %v103
    %v105 = vsub.f32 1.0, %v102
    %v106 = vsub.f32 1.0, %v104
    %v107 = vmul.f32 %v105, %v105
    %v108 = vmul.f32 %v106, %v106
    %v109 = vmul.f32 %v107, 0.25
    %v110 = vmul.f32 %v108, 0.25
    %v111 = vmul.f32 %v109, %v97
    %v112 = vmul.f32 %v110, %v98
    %v113 = vld [vmem:[#allocation2] sm:$0xff]
    %v114 = vadd.f32 %v111, %v112
    %v115 = vadd.f32 %v113, %v114
    %116 = vst [vmem:[#allocation2] sm:$0xff] %v115
    // Predicated region
    $region22: #{tpu_custom_call.1} parent=1 // pred_check
      %p117 = pneg %p56
    $region23: #{tpu_custom_call.1} parent=1 // pred_check_branch
      %119 = sbr.rel (%p117) target = $region25
    $region24: #{tpu_custom_call.1} parent=1 // pred_region
      %v120 = vld [vmem:[#allocation2] sm:$0xff]
      %121 = vadd.xlane.f32.xlu0 %v120
      %v122 = vpop.xlane.xlu0 %121
      %v123 = vrot.slane %v122, 4
      %v124 = vadd.f32 %v122, %v123
      %v125 = vrot.slane %v124, 2
      %v126 = vadd.f32 %v124, %v125
      %v127 = vrot.slane %v126, 1
      %v128 = vadd.f32 %v126, %v127
      %s129 = vtos %v128
      %s130 = smul.f32 %s129, 0.00048828125
      %s131 = scalar_lea.smem [#allocation8], 0
      %132 = sst [smem:[%s131]] %s130
    $region25: #{tpu_custom_call.1} parent=1 // pred_fallthru
      _
    // Predicated region
    $region26: #{tpu_custom_call.1} parent=1 // pred_check
      _
    $region27: #{tpu_custom_call.1} parent=1 // pred_check_branch
      %134 = sbr.rel (0) target = $region29
    $region28: #{tpu_custom_call.1} parent=1 // pred_region
      %136 = vsyncadd [#allocation5], 0
      %s138 = sshll.u32 %s2, 4
      %s139 = int_to_ptr.hbm [resolvable:$true] %s138
      %141 = dma.smem_to_hbm [#allocation8], 16, %s139, [#allocation5]
    $region29: #{tpu_custom_call.1} parent=1 // pred_fallthru
      _
    // Predicated region
    $region30: #{tpu_custom_call.1} parent=1 // pred_check
      _
    $region31: #{tpu_custom_call.1} parent=1 // pred_check_branch
      %143 = sbr.rel (0) target = $region33
    $region32: #{tpu_custom_call.1} parent=1 // pred_region
      %145 = dma.done [#allocation5], 16
    $region33: #{tpu_custom_call.1} parent=1 // pred_fallthru
      _
    %146 = sfence
    %147 = vsyncpa [#allocation4], 1
    %148 = vsyncpa [#allocation7], 1
    %149 = vsyncpa [#allocation5], 1

</llo_original>
